<compile_context>
chip_gen: v5e
topology: v5e:2x2
jax: 0.10.0
libtpu: 0.0.40
codegen_flags: <defaults>
</compile_context>

<pallas_src>
import functools

import jax
import jax.numpy as jnp
from jax.experimental import pallas as pl
from jax.experimental.pallas import tpu as pltpu

NEG_SLOPE = 0.1        # para.negative_slope
BN_EPS = 1e-5          # nn.BatchNorm1d default eps
LANE = 128
MIN_TB = 16            # bf16 native sublane packing (16, 128)
TILE_B_MAX = 2048      # large tiles amortize per-grid-step overhead (VMEM-capped below)
VMEM_TB_BUDGET = 40 << 20   # conservative working-set budget (v7x has 64 MiB physical)


def _leaky_relu(h):
    return jnp.where(h >= 0.0, h, NEG_SLOPE * h)


def _round_up(x, m):
    return ((x + m - 1) // m) * m


def _round_down(x, m):
    return (x // m) * m


# ----------------------------------------------------------------------------------
# Kernel: 4 bf16 matmuls (f32 accumulation) + bias + LeakyReLU, sigmoid epilogue.
# BN is pre-folded on the host.
# ----------------------------------------------------------------------------------
def dnn_irm_kernel(x_ref,
                   w1_ref, b1_ref,
                   w2_ref, b2_ref,
                   w3_ref, b3_ref,
                   w4_ref, b4_ref,
                   o_ref):
    h = jnp.dot(x_ref[...], w1_ref[...],
                preferred_element_type=jnp.float32) + b1_ref[...]
    h = _leaky_relu(h)
    h = jnp.dot(h.astype(jnp.bfloat16), w2_ref[...],
                preferred_element_type=jnp.float32) + b2_ref[...]
    h = _leaky_relu(h)
    h = jnp.dot(h.astype(jnp.bfloat16), w3_ref[...],
                preferred_element_type=jnp.float32) + b3_ref[...]
    h = _leaky_relu(h)
    h = jnp.dot(h.astype(jnp.bfloat16), w4_ref[...],
                preferred_element_type=jnp.float32) + b4_ref[...]
    h = _leaky_relu(h)
    # Sigmoid: exp + approx reciprocal both issue on the (otherwise idle) EUP slot.
    o_ref[...] = pl.reciprocal(1.0 + jnp.exp(-h), approx=True).astype(o_ref.dtype)


# ----------------------------------------------------------------------------------
# Host-side parameter folding (run once, cache the result).
# ----------------------------------------------------------------------------------
def _bn_affine(gamma, beta, mean, var, eps=BN_EPS):
    scale = gamma * jax.lax.rsqrt(var + eps)
    shift = beta - mean * scale
    return scale, shift


def fold_params(params):
    """Fold every BatchNorm1d (eval mode) into the adjacent Linear, pad the output
    feature dim to a lane multiple, cast weights to bf16.  Returns (folded, dim_out)."""
    s0, t0 = _bn_affine(*params["bn0"])
    s1, t1 = _bn_affine(*params["bn1"])
    s2, t2 = _bn_affine(*params["bn2"])
    s3, t3 = _bn_affine(*params["bn3"])
    s4, t4 = _bn_affine(*params["bn4"])

    # BN0 (on x) and BN1 fold into Linear1:
    #   BN1(BN0(x) @ W1 + b1) = x @ (diag(s0) W1 diag(s1)) + ((t0 @ W1 + b1) * s1 + t1)
    w1 = params["w1"] * s0[:, None] * s1[None, :]
    b1 = (t0 @ params["w1"] + params["b1"]) * s1 + t1
    # BN_i folds into Linear_i on the output side: W' = W * s, b' = b * s + t
    w2 = params["w2"] * s2[None, :]
    b2 = params["b2"] * s2 + t2
    w3 = params["w3"] * s3[None, :]
    b3 = params["b3"] * s3 + t3
    w4 = params["w4"] * s4[None, :]
    b4 = params["b4"] * s4 + t4

    dim_out = w4.shape[1]
    dout_p = _round_up(dim_out, LANE)
    if dout_p != dim_out:
        # Lane-dense output: pad W4/b4 columns; wrapper slices back to dim_out.
        w4 = jnp.pad(w4, ((0, 0), (0, dout_p - dim_out)))
        b4 = jnp.pad(b4, (0, dout_p - dim_out))

    folded = {
        # Weights bf16 (MXU inputs); biases stay f32 and are added after f32 accum.
        "w1": w1.astype(jnp.bfloat16), "b1": b1.reshape(1, -1).astype(jnp.float32),
        "w2": w2.astype(jnp.bfloat16), "b2": b2.reshape(1, -1).astype(jnp.float32),
        "w3": w3.astype(jnp.bfloat16), "b3": b3.reshape(1, -1).astype(jnp.float32),
        "w4": w4.astype(jnp.bfloat16), "b4": b4.reshape(1, -1).astype(jnp.float32),
    }
    return folded, dim_out


def _tile_b_cap_from_vmem(dim_in, E, dout_p, budget=VMEM_TB_BUDGET):
    """Largest batch tile whose working set fits the VMEM budget (v7x-safe)."""
    # Resident weights (double-buffered by the pipeliner even with a constant
    # index_map), bf16; biases f32.
    w_bytes = 2 * (2 * (dim_in * E + 2 * E * E + E * dout_p) + 4 * (3 * E + dout_p))
    # Per batch-row: double-buffered bf16 x/out tiles + f32 intermediates headroom.
    per_row = 2 * 2 * dim_in + 2 * 2 * dout_p + 4 * 4 * max(dim_in, E, dout_p)
    cap = (budget - w_bytes) // max(per_row, 1)
    return max(MIN_TB, _round_down(int(cap), MIN_TB))


# ----------------------------------------------------------------------------------
# Wrapper: batch-tiled grid, weights resident via constant index_map.
# ----------------------------------------------------------------------------------
def dnn_irm_forward(x, folded, *, dim_out, tile_b=TILE_B_MAX, trim=True):
    B, dim_in = x.shape
    E = folded["w1"].shape[1]
    dout_p = folded["w4"].shape[1]

    # Stream the batch in bf16; pad only to the bf16 sublane multiple (<=15 rows),
    # never to a full tile.  (The pad fuses with the dtype cast.)
    xb = x.astype(jnp.bfloat16)
    B_pad = _round_up(B, MIN_TB)
    if B_pad != B:
        xb = jnp.pad(xb, ((0, B_pad - B), (0, 0)))

    # Tile selection: as big as VMEM allows, but keep >= 2 grid steps whenever the
    # batch is big enough so the "parallel" axis can feed both v7x TensorCores.
    tb = min(tile_b, _tile_b_cap_from_vmem(dim_in, E, dout_p), B_pad)
    if B_pad >= 2 * MIN_TB:
        tb = min(tb, max(MIN_TB, _round_up(pl.cdiv(B_pad, 2), MIN_TB)))
    grid = (pl.cdiv(B_pad, tb),)          # ragged last tile handled by Pallas masking

    const = lambda i: (0, 0)              # weights/biases resident across batch tiles
    row = lambda i: (i, 0)                # x / out tiled over batch

    in_specs = [
        pl.BlockSpec((tb, dim_in), row),
        pl.BlockSpec((dim_in, E), const), pl.BlockSpec((1, E), const),
        pl.BlockSpec((E, E), const),      pl.BlockSpec((1, E), const),
        pl.BlockSpec((E, E), const),      pl.BlockSpec((1, E), const),
        pl.BlockSpec((E, dout_p), const), pl.BlockSpec((1, dout_p), const),
    ]
    out_spec = pl.BlockSpec((tb, dout_p), row)

    # Explicit VMEM sizing (with headroom) so the pipeline depth stays predictable
    # on v7x's 64 MiB and never silently spills when tile_b is raised.
    w_vmem = 2 * (2 * (dim_in * E + 2 * E * E + E * dout_p) + 4 * (3 * E + dout_p))
    io_vmem = 2 * 2 * tb * (dim_in + dout_p)
    act_vmem = 4 * 4 * tb * max(dim_in, E, dout_p)
    vmem_limit = int(min(48 << 20, max(2 * (w_vmem + io_vmem + act_vmem), 16 << 20)))

    rows = grid[0] * tb
    flops = 2 * rows * (dim_in * E + 2 * E * E + E * dout_p)
    bytes_accessed = (2 * (rows * dim_in + rows * dout_p
                           + dim_in * E + 2 * E * E + E * dout_p)
                      + 4 * (3 * E + dout_p))
    cost = pl.CostEstimate(flops=flops,
                           transcendentals=rows * dout_p,
                           bytes_accessed=bytes_accessed)

    out = pl.pallas_call(
        dnn_irm_kernel,
        out_shape=jax.ShapeDtypeStruct((B_pad, dout_p), jnp.bfloat16),
        grid=grid,
        in_specs=in_specs,
        out_specs=out_spec,
        compiler_params=pltpu.CompilerParams(
            dimension_semantics=("parallel",),      # batch tiles across v7x's 2 TCs
            vmem_limit_bytes=vmem_limit),
        cost_estimate=cost,
    )(xb,
      folded["w1"], folded["b1"],
      folded["w2"], folded["b2"],
      folded["w3"], folded["b3"],
      folded["w4"], folded["b4"])

    if trim:
        # NOTE: this slice is an extra HBM pass; consumers that tolerate the
        # batch/lane padding should call with trim=False and slice lazily.
        return out[:B, :dim_out]
    return out


# ----------------------------------------------------------------------------------
# Synthetic params (matches module's shapes; xavier-normal linears, fresh BN state).
# ----------------------------------------------------------------------------------
def init_params(key, dim_in, dim_emb, dim_out):
    def xavier_normal(k, fan_in, fan_out):
        std = jnp.sqrt(2.0 / (fan_in + fan_out))
        return std * jax.random.normal(k, (fan_in, fan_out), dtype=jnp.float32)

    def bias_uniform(k, fan_in, fan_out):
        bound = 1.0 / jnp.sqrt(fan_in)
        return jax.random.uniform(k, (fan_out,), minval=-bound, maxval=bound,
                                  dtype=jnp.float32)

    def bn_defaults(f):
        return (jnp.ones((f,), jnp.float32),    # gamma
                jnp.zeros((f,), jnp.float32),   # beta
                jnp.zeros((f,), jnp.float32),   # running_mean
                jnp.ones((f,), jnp.float32))    # running_var

    ks = jax.random.split(key, 8)
    return {
        "bn0": bn_defaults(dim_in),
        "w1": xavier_normal(ks[0], dim_in, dim_emb),
        "b1": bias_uniform(ks[1], dim_in, dim_emb),
        "bn1": bn_defaults(dim_emb),
        "w2": xavier_normal(ks[2], dim_emb, dim_emb),
        "b2": bias_uniform(ks[3], dim_emb, dim_emb),
        "bn2": bn_defaults(dim_emb),
        "w3": xavier_normal(ks[4], dim_emb, dim_emb),
        "b3": bias_uniform(ks[5], dim_emb, dim_emb),
        "bn3": bn_defaults(dim_emb),
        "w4": xavier_normal(ks[6], dim_emb, dim_out),
        "b4": bias_uniform(ks[7], dim_emb, dim_out),
        "bn4": bn_defaults(dim_out),
    }


def dnn_irm_reference(x, params):
    """Pure-JAX f32 reference of the same eval-mode forward (unfolded BN)."""
    def bn(h, p):
        g, b, m, v = p
        return (h - m) / jnp.sqrt(v + BN_EPS) * g + b

    h = bn(x, params["bn0"])
    h = _leaky_relu(bn(h @ params["w1"] + params["b1"], params["bn1"]))
    h = _leaky_relu(bn(h @ params["w2"] + params["b2"], params["bn2"]))
    h = _leaky_relu(bn(h @ params["w3"] + params["b3"], params["bn3"]))
    h = _leaky_relu(bn(h @ params["w4"] + params["b4"], params["bn4"]))
    return jax.nn.sigmoid(h)


if __name__ == "__main__":
    DIM_IN, DIM_EMB, DIM_OUT, BATCH = 128, 128, 64, 8

    key = jax.random.PRNGKey(0)
    k_x, k_p = jax.random.split(key)
    x = jax.random.normal(k_x, (BATCH, DIM_IN), dtype=jnp.float32)
    params = init_params(k_p, DIM_IN, DIM_EMB, DIM_OUT)

    # Fold/pad/cast parameters once (cached across calls), jit the forward.
    folded, dim_out = fold_params(params)
    fwd = jax.jit(functools.partial(dnn_irm_forward, dim_out=dim_out))

    out = fwd(x, folded)
    out = jax.block_until_ready(out)

    ref = dnn_irm_reference(x, params)
    assert out.shape == (BATCH, DIM_OUT)
    # bf16 MXU inputs + bf16 output of a sigmoid mask: compare at bf16-appropriate tol.
    err = jnp.max(jnp.abs(out.astype(jnp.float32) - ref))
    assert err < 2e-2, f"mismatch vs reference (max abs err {err})"

    print("KERNEL_OK")
</pallas_src>

<mosaic_0001>
module attributes {stable_mosaic.version = 11 : i64} {
  func.func @dnn_irm_kernel(%arg0: i32, %arg1: memref<16x128xbf16, #tpu.memory_space<vmem>>, %arg2: memref<128x128xbf16, #tpu.memory_space<vmem>>, %arg3: memref<1x128xf32, #tpu.memory_space<vmem>>, %arg4: memref<128x128xbf16, #tpu.memory_space<vmem>>, %arg5: memref<1x128xf32, #tpu.memory_space<vmem>>, %arg6: memref<128x128xbf16, #tpu.memory_space<vmem>>, %arg7: memref<1x128xf32, #tpu.memory_space<vmem>>, %arg8: memref<128x128xbf16, #tpu.memory_space<vmem>>, %arg9: memref<1x128xf32, #tpu.memory_space<vmem>>, %arg10: memref<16x128xbf16, #tpu.memory_space<vmem>>) attributes {dimension_semantics = [#tpu.dimension_semantics<parallel>], iteration_bounds = array<i64: 1>, scalar_prefetch = 0 : i64, scratch_operands = 0 : i64, tpu.core_type = #tpu.core_type<tc>, window_params = [{transform_indices = @transform_0, window_bounds = array<i64: 16, 128>}, {pipeline_mode = #tpu.pipeline_mode<synchronous>, transform_indices = @transform_1, window_bounds = array<i64: 128, 128>}, {pipeline_mode = #tpu.pipeline_mode<synchronous>, transform_indices = @transform_2, window_bounds = array<i64: 1, 128>}, {pipeline_mode = #tpu.pipeline_mode<synchronous>, transform_indices = @transform_3, window_bounds = array<i64: 128, 128>}, {pipeline_mode = #tpu.pipeline_mode<synchronous>, transform_indices = @transform_4, window_bounds = array<i64: 1, 128>}, {pipeline_mode = #tpu.pipeline_mode<synchronous>, transform_indices = @transform_5, window_bounds = array<i64: 128, 128>}, {pipeline_mode = #tpu.pipeline_mode<synchronous>, transform_indices = @transform_6, window_bounds = array<i64: 1, 128>}, {pipeline_mode = #tpu.pipeline_mode<synchronous>, transform_indices = @transform_7, window_bounds = array<i64: 128, 128>}, {pipeline_mode = #tpu.pipeline_mode<synchronous>, transform_indices = @transform_8, window_bounds = array<i64: 1, 128>}, {transform_indices = @transform_9, window_bounds = array<i64: 16, 128>}]} {
    %c0 = arith.constant 0 : index
    %c0_0 = arith.constant 0 : index
    %0 = vector.load %arg1[%c0, %c0_0] : memref<16x128xbf16, #tpu.memory_space<vmem>>, vector<16x128xbf16>
    %c0_1 = arith.constant 0 : index
    %c0_2 = arith.constant 0 : index
    %1 = vector.load %arg2[%c0_1, %c0_2] : memref<128x128xbf16, #tpu.memory_space<vmem>>, vector<128x128xbf16>
    %cst = arith.constant dense<0.000000e+00> : vector<16x128xf32>
    %2 = tpu.matmul %0, %1, %cst {dimension_numbers = #tpu.dot_dimension_numbers<[1], [0], [0], [1], [0, 0, 1, 1], [], []>} : vector<16x128xbf16>, vector<128x128xbf16>, vector<16x128xf32> -> vector<16x128xf32>
    %c0_3 = arith.constant 0 : index
    %c0_4 = arith.constant 0 : index
    %3 = vector.load %arg3[%c0_3, %c0_4] : memref<1x128xf32, #tpu.memory_space<vmem>>, vector<1x128xf32>
    %4 = vector.broadcast %3 : vector<1x128xf32> to vector<16x128xf32>
    %5 = arith.addf %2, %4 : vector<16x128xf32>
    %cst_5 = arith.constant 0.000000e+00 : f32
    %6 = vector.broadcast %cst_5 : f32 to vector<16x128xf32>
    %7 = arith.cmpf oge, %5, %6 : vector<16x128xf32>
    %cst_6 = arith.constant 1.000000e-01 : f32
    %8 = vector.broadcast %cst_6 : f32 to vector<16x128xf32>
    %9 = arith.mulf %8, %5 : vector<16x128xf32>
    %10 = arith.select %7, %5, %9 : vector<16x128xi1>, vector<16x128xf32>
    %11 = arith.truncf %10 : vector<16x128xf32> to vector<16x128xbf16>
    %c0_7 = arith.constant 0 : index
    %c0_8 = arith.constant 0 : index
    %12 = vector.load %arg4[%c0_7, %c0_8] : memref<128x128xbf16, #tpu.memory_space<vmem>>, vector<128x128xbf16>
    %cst_9 = arith.constant dense<0.000000e+00> : vector<16x128xf32>
    %13 = tpu.matmul %11, %12, %cst_9 {dimension_numbers = #tpu.dot_dimension_numbers<[1], [0], [0], [1], [0, 0, 1, 1], [], []>} : vector<16x128xbf16>, vector<128x128xbf16>, vector<16x128xf32> -> vector<16x128xf32>
    %c0_10 = arith.constant 0 : index
    %c0_11 = arith.constant 0 : index
    %14 = vector.load %arg5[%c0_10, %c0_11] : memref<1x128xf32, #tpu.memory_space<vmem>>, vector<1x128xf32>
    %15 = vector.broadcast %14 : vector<1x128xf32> to vector<16x128xf32>
    %16 = arith.addf %13, %15 : vector<16x128xf32>
    %cst_12 = arith.constant 0.000000e+00 : f32
    %17 = vector.broadcast %cst_12 : f32 to vector<16x128xf32>
    %18 = arith.cmpf oge, %16, %17 : vector<16x128xf32>
    %cst_13 = arith.constant 1.000000e-01 : f32
    %19 = vector.broadcast %cst_13 : f32 to vector<16x128xf32>
    %20 = arith.mulf %19, %16 : vector<16x128xf32>
    %21 = arith.select %18, %16, %20 : vector<16x128xi1>, vector<16x128xf32>
    %22 = arith.truncf %21 : vector<16x128xf32> to vector<16x128xbf16>
    %c0_14 = arith.constant 0 : index
    %c0_15 = arith.constant 0 : index
    %23 = vector.load %arg6[%c0_14, %c0_15] : memref<128x128xbf16, #tpu.memory_space<vmem>>, vector<128x128xbf16>
    %cst_16 = arith.constant dense<0.000000e+00> : vector<16x128xf32>
    %24 = tpu.matmul %22, %23, %cst_16 {dimension_numbers = #tpu.dot_dimension_numbers<[1], [0], [0], [1], [0, 0, 1, 1], [], []>} : vector<16x128xbf16>, vector<128x128xbf16>, vector<16x128xf32> -> vector<16x128xf32>
    %c0_17 = arith.constant 0 : index
    %c0_18 = arith.constant 0 : index
    %25 = vector.load %arg7[%c0_17, %c0_18] : memref<1x128xf32, #tpu.memory_space<vmem>>, vector<1x128xf32>
    %26 = vector.broadcast %25 : vector<1x128xf32> to vector<16x128xf32>
    %27 = arith.addf %24, %26 : vector<16x128xf32>
    %cst_19 = arith.constant 0.000000e+00 : f32
    %28 = vector.broadcast %cst_19 : f32 to vector<16x128xf32>
    %29 = arith.cmpf oge, %27, %28 : vector<16x128xf32>
    %cst_20 = arith.constant 1.000000e-01 : f32
    %30 = vector.broadcast %cst_20 : f32 to vector<16x128xf32>
    %31 = arith.mulf %30, %27 : vector<16x128xf32>
    %32 = arith.select %29, %27, %31 : vector<16x128xi1>, vector<16x128xf32>
    %33 = arith.truncf %32 : vector<16x128xf32> to vector<16x128xbf16>
    %c0_21 = arith.constant 0 : index
    %c0_22 = arith.constant 0 : index
    %34 = vector.load %arg8[%c0_21, %c0_22] : memref<128x128xbf16, #tpu.memory_space<vmem>>, vector<128x128xbf16>
    %cst_23 = arith.constant dense<0.000000e+00> : vector<16x128xf32>
    %35 = tpu.matmul %33, %34, %cst_23 {dimension_numbers = #tpu.dot_dimension_numbers<[1], [0], [0], [1], [0, 0, 1, 1], [], []>} : vector<16x128xbf16>, vector<128x128xbf16>, vector<16x128xf32> -> vector<16x128xf32>
    %c0_24 = arith.constant 0 : index
    %c0_25 = arith.constant 0 : index
    %36 = vector.load %arg9[%c0_24, %c0_25] : memref<1x128xf32, #tpu.memory_space<vmem>>, vector<1x128xf32>
    %37 = vector.broadcast %36 : vector<1x128xf32> to vector<16x128xf32>
    %38 = arith.addf %35, %37 : vector<16x128xf32>
    %cst_26 = arith.constant 0.000000e+00 : f32
    %39 = vector.broadcast %cst_26 : f32 to vector<16x128xf32>
    %40 = arith.cmpf oge, %38, %39 : vector<16x128xf32>
    %cst_27 = arith.constant 1.000000e-01 : f32
    %41 = vector.broadcast %cst_27 : f32 to vector<16x128xf32>
    %42 = arith.mulf %41, %38 : vector<16x128xf32>
    %43 = arith.select %40, %38, %42 : vector<16x128xi1>, vector<16x128xf32>
    %cst_28 = arith.constant 0.000000e+00 : f32
    %44 = vector.broadcast %cst_28 : f32 to vector<16x128xf32>
    %45 = arith.subf %44, %43 : vector<16x128xf32>
    %46 = math.exp %45 : vector<16x128xf32>
    %cst_29 = arith.constant 1.000000e+00 : f32
    %47 = vector.broadcast %cst_29 : f32 to vector<16x128xf32>
    %48 = arith.addf %47, %46 : vector<16x128xf32>
    %49 = tpu.reciprocal %48 {approx = true} : vector<16x128xf32> -> vector<16x128xf32>
    %50 = arith.truncf %49 : vector<16x128xf32> to vector<16x128xbf16>
    %c0_30 = arith.constant 0 : index
    %c0_31 = arith.constant 0 : index
    %51 = vector.load %arg10[%c0_30, %c0_31] : memref<16x128xbf16, #tpu.memory_space<vmem>>, vector<16x128xbf16>
    tpu.vector_store %arg10[%c0_30, %c0_31], %50 {strides = array<i32>} : memref<16x128xbf16, #tpu.memory_space<vmem>>, vector<16x128xbf16>,
    return
  }
  func.func @transform_0(%arg0: i32) -> (i32, i32) {
    %c0_i32 = arith.constant 0 : i32
    %c0_i32_0 = arith.constant 0 : i32
    return %arg0, %c0_i32 : i32, i32
  }
  func.func @transform_1(%arg0: i32) -> (i32, i32) {
    %c0_i32 = arith.constant 0 : i32
    %c0_i32_0 = arith.constant 0 : i32
    %c0_i32_1 = arith.constant 0 : i32
    return %c0_i32, %c0_i32_0 : i32, i32
  }
  func.func @transform_2(%arg0: i32) -> (i32, i32) {
    %c0_i32 = arith.constant 0 : i32
    %c0_i32_0 = arith.constant 0 : i32
    %c0_i32_1 = arith.constant 0 : i32
    return %c0_i32, %c0_i32_0 : i32, i32
  }
  func.func @transform_3(%arg0: i32) -> (i32, i32) {
    %c0_i32 = arith.constant 0 : i32
    %c0_i32_0 = arith.constant 0 : i32
    %c0_i32_1 = arith.constant 0 : i32
    return %c0_i32, %c0_i32_0 : i32, i32
  }
  func.func @transform_4(%arg0: i32) -> (i32, i32) {
    %c0_i32 = arith.constant 0 : i32
    %c0_i32_0 = arith.constant 0 : i32
    %c0_i32_1 = arith.constant 0 : i32
    return %c0_i32, %c0_i32_0 : i32, i32
  }
  func.func @transform_5(%arg0: i32) -> (i32, i32) {
    %c0_i32 = arith.constant 0 : i32
    %c0_i32_0 = arith.constant 0 : i32
    %c0_i32_1 = arith.constant 0 : i32
    return %c0_i32, %c0_i32_0 : i32, i32
  }
  func.func @transform_6(%arg0: i32) -> (i32, i32) {
    %c0_i32 = arith.constant 0 : i32
    %c0_i32_0 = arith.constant 0 : i32
    %c0_i32_1 = arith.constant 0 : i32
    return %c0_i32, %c0_i32_0 : i32, i32
  }
  func.func @transform_7(%arg0: i32) -> (i32, i32) {
    %c0_i32 = arith.constant 0 : i32
    %c0_i32_0 = arith.constant 0 : i32
    %c0_i32_1 = arith.constant 0 : i32
    return %c0_i32, %c0_i32_0 : i32, i32
  }
  func.func @transform_8(%arg0: i32) -> (i32, i32) {
    %c0_i32 = arith.constant 0 : i32
    %c0_i32_0 = arith.constant 0 : i32
    %c0_i32_1 = arith.constant 0 : i32
    return %c0_i32, %c0_i32_0 : i32, i32
  }
  func.func @transform_9(%arg0: i32) -> (i32, i32) {
    %c0_i32 = arith.constant 0 : i32
    %c0_i32_0 = arith.constant 0 : i32
    return %arg0, %c0_i32 : i32, i32
  }
}

</mosaic_0001>

<llo_original>
// kernel: dnn_irm_forward.1
$region0: #{dnn_irm_forward.1}
  #allocation0 [shape = 'u32[]', space=smem, size = 0x4, offset = 0x4, fixed_abs, tag = 'smem constant byte address 0x4 - core index']
  #allocation1 [shape = 'u32[72,128]{1,0:T(1,128)}', space=vmem, size = 0x9000, scoped, tag = 'internal scratch']
  %s0 = inlined_call_operand.vmem [shape: bf16[16,128], index: 0, kind: input, shape index: {}]
  %s1 = inlined_call_operand.hbm [shape: bf16[128,128], index: 1, kind: input, shape index: {}]
  %s2 = inlined_call_operand.vmem [shape: f32[1,128], index: 2, kind: input, shape index: {}]
  %s3 = inlined_call_operand.hbm [shape: bf16[128,128], index: 3, kind: input, shape index: {}]
  %s4 = inlined_call_operand.vmem [shape: f32[1,128], index: 4, kind: input, shape index: {}]
  %s5 = inlined_call_operand.hbm [shape: bf16[128,128], index: 5, kind: input, shape index: {}]
  %s6 = inlined_call_operand.vmem [shape: f32[1,128], index: 6, kind: input, shape index: {}]
  %s7 = inlined_call_operand.hbm [shape: bf16[128,128], index: 7, kind: input, shape index: {}]
  %s8 = inlined_call_operand.vmem [shape: f32[1,128], index: 8, kind: input, shape index: {}]
  %s9 = inlined_call_operand.vmem [shape: bf16[16,128], index: 9, kind: output, shape index: {}]
  %s10 = sld [smem:[#allocation0]]
  $region62: #{dnn_irm_forward.1} parent=0
    _
  %s12 = ssub.s32 1, %s10
  %s13 = scalar_select 0, %s12, %s10
  $region1: #{dnn_irm_forward.1} parent=0
    #allocation2 [shape = 'u8[32768]{0}', space=vmem, size = 0x8000, scoped, tag = 'input window, operand 1, single buffered']
    #allocation3 [shape = 's32[1]{0}', space=sflag, size = 0x4, scoped, tag = 'scoped memory for dnn_irm_forward.1']
    #allocation4 [shape = 'u8[32768]{0}', space=vmem, size = 0x8000, scoped, tag = 'input window, operand 3, single buffered']
    #allocation5 [shape = 's32[1]{0}', space=sflag, size = 0x4, scoped, tag = 'scoped memory for dnn_irm_forward.1']
    #allocation6 [shape = 'u8[32768]{0}', space=vmem, size = 0x8000, scoped, tag = 'input window, operand 5, single buffered']
    #allocation7 [shape = 'u8[32768]{0}', space=vmem, size = 0x8000, scoped, tag = 'input window, operand 7, single buffered']
    #allocation8 [shape = 's32[1]{0}', space=sflag, size = 0x4, scoped, tag = 'scoped memory for dnn_irm_forward.1']
    %14 = vsyncpa [#allocation3], 0
    %15 = vsyncpa [#allocation5], 0
    %16 = vsyncpa [#allocation8], 0
    // Predicated region
    $region2: #{dnn_irm_forward.1} parent=1 // pred_check
      _
    $region3: #{dnn_irm_forward.1} parent=1 // pred_check_branch
      %18 = sbr.rel (0) target = $region5
    $region4: #{dnn_irm_forward.1} parent=1 // pred_region
      _
    $region5: #{dnn_irm_forward.1} parent=1 // pred_fallthru
      _
    // Predicated region
    $region6: #{dnn_irm_forward.1} parent=1 // pred_check
      _
    $region7: #{dnn_irm_forward.1} parent=1 // pred_check_branch
      %20 = sbr.rel (0) target = $region9
    $region8: #{dnn_irm_forward.1} parent=1 // pred_region
      %22 = vsyncadd [#allocation3], 0
      %s23 = sshll.u32 %s1, 4
      %s24 = int_to_ptr.hbm [resolvable:$true] %s23
      %s25 = sshll.u32 [#allocation2], 4
      %s26 = int_to_ptr.vmem [resolvable:$true] %s25
      %31 = dma.hbm_to_vmem [thread:$0]  %s24, 1024, %s26, [#allocation3], 64, 64, 4
    $region9: #{dnn_irm_forward.1} parent=1 // pred_fallthru
      _
    // Predicated region
    $region10: #{dnn_irm_forward.1} parent=1 // pred_check
      _
    $region11: #{dnn_irm_forward.1} parent=1 // pred_check_branch
      %33 = sbr.rel (0) target = $region13
    $region12: #{dnn_irm_forward.1} parent=1 // pred_region
      _
    $region13: #{dnn_irm_forward.1} parent=1 // pred_fallthru
      _
    // Predicated region
    $region14: #{dnn_irm_forward.1} parent=1 // pred_check
      _
    $region15: #{dnn_irm_forward.1} parent=1 // pred_check_branch
      %35 = sbr.rel (0) target = $region17
    $region16: #{dnn_irm_forward.1} parent=1 // pred_region
      %37 = vsyncadd [#allocation5], 0
      %s38 = sshll.u32 %s3, 4
      %s39 = int_to_ptr.hbm [resolvable:$true] %s38
      %s40 = sshll.u32 [#allocation4], 4
      %s41 = int_to_ptr.vmem [resolvable:$true] %s40
      %46 = dma.hbm_to_vmem [thread:$0]  %s39, 1024, %s41, [#allocation5], 64, 64, 4
    $region17: #{dnn_irm_forward.1} parent=1 // pred_fallthru
      _
    // Predicated region
    $region18: #{dnn_irm_forward.1} parent=1 // pred_check
      _
    $region19: #{dnn_irm_forward.1} parent=1 // pred_check_branch
      %48 = sbr.rel (0) target = $region21
    $region20: #{dnn_irm_forward.1} parent=1 // pred_region
      _
    $region21: #{dnn_irm_forward.1} parent=1 // pred_fallthru
      _
    // Predicated region
    $region22: #{dnn_irm_forward.1} parent=1 // pred_check
      _
    $region23: #{dnn_irm_forward.1} parent=1 // pred_check_branch
      %50 = sbr.rel (0) target = $region25
    $region24: #{dnn_irm_forward.1} parent=1 // pred_region
      %52 = vsyncadd [#allocation5], 0
      %s53 = sshll.u32 %s5, 4
      %s54 = int_to_ptr.hbm [resolvable:$true] %s53
      %s55 = sshll.u32 [#allocation6], 4
      %s56 = int_to_ptr.vmem [resolvable:$true] %s55
      %61 = dma.hbm_to_vmem [thread:$0]  %s54, 1024, %s56, [#allocation5], 64, 64, 4
    $region25: #{dnn_irm_forward.1} parent=1 // pred_fallthru
      _
    // Predicated region
    $region26: #{dnn_irm_forward.1} parent=1 // pred_check
      _
    $region27: #{dnn_irm_forward.1} parent=1 // pred_check_branch
      %63 = sbr.rel (0) target = $region29
    $region28: #{dnn_irm_forward.1} parent=1 // pred_region
      _
    $region29: #{dnn_irm_forward.1} parent=1 // pred_fallthru
      _
    // Predicated region
    $region30: #{dnn_irm_forward.1} parent=1 // pred_check
      _
    $region31: #{dnn_irm_forward.1} parent=1 // pred_check_branch
      %65 = sbr.rel (0) target = $region33
    $region32: #{dnn_irm_forward.1} parent=1 // pred_region
      %67 = vsyncadd [#allocation8], 0
      %s68 = sshll.u32 %s7, 4
      %s69 = int_to_ptr.hbm [resolvable:$true] %s68
      %s70 = sshll.u32 [#allocation7], 4
      %s71 = int_to_ptr.vmem [resolvable:$true] %s70
      %76 = dma.hbm_to_vmem [thread:$0]  %s69, 1024, %s71, [#allocation8], 64, 64, 4
    $region33: #{dnn_irm_forward.1} parent=1 // pred_fallthru
      _
    // Predicated region
    $region34: #{dnn_irm_forward.1} parent=1 // pred_check
      _
    $region35: #{dnn_irm_forward.1} parent=1 // pred_check_branch
      %78 = sbr.rel (0) target = $region37
    $region36: #{dnn_irm_forward.1} parent=1 // pred_region
      _
    $region37: #{dnn_irm_forward.1} parent=1 // pred_fallthru
      _
    // Predicated region
    $region38: #{dnn_irm_forward.1} parent=1 // pred_check
      _
    $region39: #{dnn_irm_forward.1} parent=1 // pred_check_branch
      %80 = sbr.rel (0) target = $region41
    $region40: #{dnn_irm_forward.1} parent=1 // pred_region
      %82 = dma.done [#allocation3], 1024
    $region41: #{dnn_irm_forward.1} parent=1 // pred_fallthru
      _
    // Predicated region
    $region42: #{dnn_irm_forward.1} parent=1 // pred_check
      _
    $region43: #{dnn_irm_forward.1} parent=1 // pred_check_branch
      %84 = sbr.rel (0) target = $region45
    $region44: #{dnn_irm_forward.1} parent=1 // pred_region
      %86 = dma.done [#allocation5], 1024
    $region45: #{dnn_irm_forward.1} parent=1 // pred_fallthru
      _
    // Predicated region
    $region46: #{dnn_irm_forward.1} parent=1 // pred_check
      _
    $region47: #{dnn_irm_forward.1} parent=1 // pred_check_branch
      %88 = sbr.rel (0) target = $region49
    $region48: #{dnn_irm_forward.1} parent=1 // pred_region
      %90 = dma.done [#allocation5], 1024
    $region49: #{dnn_irm_forward.1} parent=1 // pred_fallthru
      _
    // Predicated region
    $region50: #{dnn_irm_forward.1} parent=1 // pred_check
      _
    $region51: #{dnn_irm_forward.1} parent=1 // pred_check_branch
      %92 = sbr.rel (0) target = $region53
    $region52: #{dnn_irm_forward.1} parent=1 // pred_region
      %94 = dma.done [#allocation8], 1024
    $region53: #{dnn_irm_forward.1} parent=1 // pred_fallthru
      _
    %v95 = vld [vmem:[%s0] sm:$0xf]
    %v96 = vld [vmem:[%s0 + $0x4] sm:$0xf]
    %v97 = vld [vmem:[#allocation2] sm:$0xf]
    %v98 = vld [vmem:[#allocation2 + $0x4] sm:$0xf]
    %v99 = vld [vmem:[#allocation2 + $0x8] sm:$0xf]
    %v100 = vld [vmem:[#allocation2 + $0xc] sm:$0xf]
    %v101 = vld [vmem:[#allocation2 + $0x10] sm:$0xf]
    %v102 = vld [vmem:[#allocation2 + $0x14] sm:$0xf]
    %v103 = vld [vmem:[#allocation2 + $0x18] sm:$0xf]
    %v104 = vld [vmem:[#allocation2 + $0x1c] sm:$0xf]
    %v105 = vld [vmem:[#allocation2 + $0x20] sm:$0xf]
    %v106 = vld [vmem:[#allocation2 + $0x24] sm:$0xf]
    %v107 = vld [vmem:[#allocation2 + $0x28] sm:$0xf]
    %v108 = vld [vmem:[#allocation2 + $0x2c] sm:$0xf]
    %v109 = vld [vmem:[#allocation2 + $0x30] sm:$0xf]
    %v110 = vld [vmem:[#allocation2 + $0x34] sm:$0xf]
    %v111 = vld [vmem:[#allocation2 + $0x38] sm:$0xf]
    %v112 = vld [vmem:[#allocation2 + $0x3c] sm:$0xf]
    %v113 = vld [vmem:[%s2] sm:$0x1]
    %v115 = vperm.slane %v113, 0
    %v119 = vunpack.c.l.b16 %v95
    %v120 = vunpack.c.l.b16 %v96
    %v121 = vpack.c.b16 %v120, %v119
    %v139 = vunpack.c.l.b16 %v97
    %v140 = vunpack.c.l.b16 %v98
    %v141 = vunpack.c.l.b16 %v99
    %v142 = vunpack.c.l.b16 %v100
    %v143 = vunpack.c.l.b16 %v101
    %v144 = vunpack.c.l.b16 %v102
    %v145 = vunpack.c.l.b16 %v103
    %v146 = vunpack.c.l.b16 %v104
    %v147 = vunpack.c.l.b16 %v105
    %v148 = vunpack.c.l.b16 %v106
    %v149 = vunpack.c.l.b16 %v107
    %v150 = vunpack.c.l.b16 %v108
    %v151 = vunpack.c.l.b16 %v109
    %v152 = vunpack.c.l.b16 %v110
    %v153 = vunpack.c.l.b16 %v111
    %v154 = vunpack.c.l.b16 %v112
    %v155 = vpack.c.b16 %v140, %v139
    %v156 = vpack.c.b16 %v142, %v141
    %v157 = vpack.c.b16 %v144, %v143
    %v158 = vpack.c.b16 %v146, %v145
    %v159 = vpack.c.b16 %v148, %v147
    %v160 = vpack.c.b16 %v150, %v149
    %v161 = vpack.c.b16 %v152, %v151
    %v162 = vpack.c.b16 %v154, %v153
    %171 = vmatpush.bf16.msra.mxu0 %v162
    %172 = vmatpush.bf16.msra.mxu0 %v161
    %173 = vmatpush.bf16.msra.mxu0 %v160
    %174 = vmatpush.bf16.msra.mxu0 %v159
    %175 = vmatpush.bf16.msra.mxu0 %v158
    %176 = vmatpush.bf16.msra.mxu0 %v157
    %177 = vmatpush.bf16.msra.mxu0 %v156
    %178 = vmatpush.bf16.msra.mxu0 %v155
    %179 = vmatmul.bf16.gmra.mxu0 %v121
    %v180 = vpop.f32.mrf.mxu0
    %v181 = vadd.f32 %v115, %v180
    %v182 = vpop.f32.mrf.mxu0
    %v183 = vadd.f32 %v115, %v182
    %184 = vdwg.mxu0
    %vm185 = vcmp.ge.f32.partialorder %v181, 0.0
    %vm186 = vcmp.ge.f32.partialorder %v183, 0.0
    %v187 = vmul.f32 %v181, 0.1
    %v188 = vmul.f32 %v183, 0.1
    %v189 = vsel %vm185, %v181, %v187
    %v190 = vsel %vm186, %v183, %v188
    %v191 = vpack.c.bf16 %v190, %v189
    %v192 = vld [vmem:[#allocation4] sm:$0xf]
    %v193 = vld [vmem:[#allocation4 + $0x4] sm:$0xf]
    %v194 = vld [vmem:[#allocation4 + $0x8] sm:$0xf]
    %v195 = vld [vmem:[#allocation4 + $0xc] sm:$0xf]
    %v196 = vld [vmem:[#allocation4 + $0x10] sm:$0xf]
    %v197 = vld [vmem:[#allocation4 + $0x14] sm:$0xf]
    %v198 = vld [vmem:[#allocation4 + $0x18] sm:$0xf]
    %v199 = vld [vmem:[#allocation4 + $0x1c] sm:$0xf]
    %v200 = vld [vmem:[#allocation4 + $0x20] sm:$0xf]
    %v201 = vld [vmem:[#allocation4 + $0x24] sm:$0xf]
    %v202 = vld [vmem:[#allocation4 + $0x28] sm:$0xf]
    %v203 = vld [vmem:[#allocation4 + $0x2c] sm:$0xf]
    %v204 = vld [vmem:[#allocation4 + $0x30] sm:$0xf]
    %v205 = vld [vmem:[#allocation4 + $0x34] sm:$0xf]
    %v206 = vld [vmem:[#allocation4 + $0x38] sm:$0xf]
    %v207 = vld [vmem:[#allocation4 + $0x3c] sm:$0xf]
    %v208 = vld [vmem:[%s4] sm:$0x1]
    %v210 = vperm.slane %v208, 0
    %v228 = vunpack.c.l.b16 %v192
    %v229 = vunpack.c.l.b16 %v193
    %v230 = vunpack.c.l.b16 %v194
    %v231 = vunpack.c.l.b16 %v195
    %v232 = vunpack.c.l.b16 %v196
    %v233 = vunpack.c.l.b16 %v197
    %v234 = vunpack.c.l.b16 %v198
    %v235 = vunpack.c.l.b16 %v199
    %v236 = vunpack.c.l.b16 %v200
    %v237 = vunpack.c.l.b16 %v201
    %v238 = vunpack.c.l.b16 %v202
    %v239 = vunpack.c.l.b16 %v203
    %v240 = vunpack.c.l.b16 %v204
    %v241 = vunpack.c.l.b16 %v205
    %v242 = vunpack.c.l.b16 %v206
    %v243 = vunpack.c.l.b16 %v207
    %v244 = vpack.c.b16 %v229, %v228
    %v245 = vpack.c.b16 %v231, %v230
    %v246 = vpack.c.b16 %v233, %v232
    %v247 = vpack.c.b16 %v235, %v234
    %v248 = vpack.c.b16 %v237, %v236
    %v249 = vpack.c.b16 %v239, %v238
    %v250 = vpack.c.b16 %v241, %v240
    %v251 = vpack.c.b16 %v243, %v242
    %260 = vmatpush.bf16.msra.mxu0 %v251
    %261 = vmatpush.bf16.msra.mxu0 %v250
    %262 = vmatpush.bf16.msra.mxu0 %v249
    %263 = vmatpush.bf16.msra.mxu0 %v248
    %264 = vmatpush.bf16.msra.mxu0 %v247
    %265 = vmatpush.bf16.msra.mxu0 %v246
    %266 = vmatpush.bf16.msra.mxu0 %v245
    %267 = vmatpush.bf16.msra.mxu0 %v244
    %268 = vmatmul.bf16.gmra.mxu0 %v191
    %v269 = vpop.f32.mrf.mxu0
    %v270 = vadd.f32 %v210, %v269
    %v271 = vpop.f32.mrf.mxu0
    %v272 = vadd.f32 %v210, %v271
    %273 = vdwg.mxu0
    %vm274 = vcmp.ge.f32.partialorder %v270, 0.0
    %vm275 = vcmp.ge.f32.partialorder %v272, 0.0
    %v276 = vmul.f32 %v270, 0.1
    %v277 = vmul.f32 %v272, 0.1
    %v278 = vsel %vm274, %v270, %v276
    %v279 = vsel %vm275, %v272, %v277
    %v280 = vpack.c.bf16 %v279, %v278
    %v281 = vld [vmem:[#allocation6] sm:$0xf]
    %v282 = vld [vmem:[#allocation6 + $0x4] sm:$0xf]
    %v283 = vld [vmem:[#allocation6 + $0x8] sm:$0xf]
    %v284 = vld [vmem:[#allocation6 + $0xc] sm:$0xf]
    %v285 = vld [vmem:[#allocation6 + $0x10] sm:$0xf]
    %v286 = vld [vmem:[#allocation6 + $0x14] sm:$0xf]
    %v287 = vld [vmem:[#allocation6 + $0x18] sm:$0xf]
    %v288 = vld [vmem:[#allocation6 + $0x1c] sm:$0xf]
    %v289 = vld [vmem:[#allocation6 + $0x20] sm:$0xf]
    %v290 = vld [vmem:[#allocation6 + $0x24] sm:$0xf]
    %v291 = vld [vmem:[#allocation6 + $0x28] sm:$0xf]
    %v292 = vld [vmem:[#allocation6 + $0x2c] sm:$0xf]
    %v293 = vld [vmem:[#allocation6 + $0x30] sm:$0xf]
    %v294 = vld [vmem:[#allocation6 + $0x34] sm:$0xf]
    %v295 = vld [vmem:[#allocation6 + $0x38] sm:$0xf]
    %v296 = vld [vmem:[#allocation6 + $0x3c] sm:$0xf]
    %v297 = vld [vmem:[%s6] sm:$0x1]
    %v299 = vperm.slane %v297, 0
    %v317 = vunpack.c.l.b16 %v281
    %v318 = vunpack.c.l.b16 %v282
    %v319 = vunpack.c.l.b16 %v283
    %v320 = vunpack.c.l.b16 %v284
    %v321 = vunpack.c.l.b16 %v285
    %v322 = vunpack.c.l.b16 %v286
    %v323 = vunpack.c.l.b16 %v287
    %v324 = vunpack.c.l.b16 %v288
    %v325 = vunpack.c.l.b16 %v289
    %v326 = vunpack.c.l.b16 %v290
    %v327 = vunpack.c.l.b16 %v291
    %v328 = vunpack.c.l.b16 %v292
    %v329 = vunpack.c.l.b16 %v293
    %v330 = vunpack.c.l.b16 %v294
    %v331 = vunpack.c.l.b16 %v295
    %v332 = vunpack.c.l.b16 %v296
    %v333 = vpack.c.b16 %v318, %v317
    %v334 = vpack.c.b16 %v320, %v319
    %v335 = vpack.c.b16 %v322, %v321
    %v336 = vpack.c.b16 %v324, %v323
    %v337 = vpack.c.b16 %v326, %v325
    %v338 = vpack.c.b16 %v328, %v327
    %v339 = vpack.c.b16 %v330, %v329
    %v340 = vpack.c.b16 %v332, %v331
    %349 = vmatpush.bf16.msra.mxu0 %v340
    %350 = vmatpush.bf16.msra.mxu0 %v339
    %351 = vmatpush.bf16.msra.mxu0 %v338
    %352 = vmatpush.bf16.msra.mxu0 %v337
    %353 = vmatpush.bf16.msra.mxu0 %v336
    %354 = vmatpush.bf16.msra.mxu0 %v335
    %355 = vmatpush.bf16.msra.mxu0 %v334
    %356 = vmatpush.bf16.msra.mxu0 %v333
    %357 = vmatmul.bf16.gmra.mxu0 %v280
    %v358 = vpop.f32.mrf.mxu0
    %v359 = vadd.f32 %v299, %v358
    %v360 = vpop.f32.mrf.mxu0
    %v361 = vadd.f32 %v299, %v360
    %362 = vdwg.mxu0
    %vm363 = vcmp.ge.f32.partialorder %v359, 0.0
    %vm364 = vcmp.ge.f32.partialorder %v361, 0.0
    %v365 = vmul.f32 %v359, 0.1
    %v366 = vmul.f32 %v361, 0.1
    %v367 = vsel %vm363, %v359, %v365
    %v368 = vsel %vm364, %v361, %v366
    %v369 = vpack.c.bf16 %v368, %v367
    %v370 = vld [vmem:[#allocation7] sm:$0xf]
    %v371 = vld [vmem:[#allocation7 + $0x4] sm:$0xf]
    %v372 = vld [vmem:[#allocation7 + $0x8] sm:$0xf]
    %v373 = vld [vmem:[#allocation7 + $0xc] sm:$0xf]
    %v374 = vld [vmem:[#allocation7 + $0x10] sm:$0xf]
    %v375 = vld [vmem:[#allocation7 + $0x14] sm:$0xf]
    %v376 = vld [vmem:[#allocation7 + $0x18] sm:$0xf]
    %v377 = vld [vmem:[#allocation7 + $0x1c] sm:$0xf]
    %v378 = vld [vmem:[#allocation7 + $0x20] sm:$0xf]
    %v379 = vld [vmem:[#allocation7 + $0x24] sm:$0xf]
    %v380 = vld [vmem:[#allocation7 + $0x28] sm:$0xf]
    %v381 = vld [vmem:[#allocation7 + $0x2c] sm:$0xf]
    %v382 = vld [vmem:[#allocation7 + $0x30] sm:$0xf]
    %v383 = vld [vmem:[#allocation7 + $0x34] sm:$0xf]
    %v384 = vld [vmem:[#allocation7 + $0x38] sm:$0xf]
    %v385 = vld [vmem:[#allocation7 + $0x3c] sm:$0xf]
    %v386 = vld [vmem:[%s8] sm:$0x1]
    %v388 = vperm.slane %v386, 0
    %v406 = vunpack.c.l.b16 %v370
    %v407 = vunpack.c.l.b16 %v371
    %v408 = vunpack.c.l.b16 %v372
    %v409 = vunpack.c.l.b16 %v373
    %v410 = vunpack.c.l.b16 %v374
    %v411 = vunpack.c.l.b16 %v375
    %v412 = vunpack.c.l.b16 %v376
    %v413 = vunpack.c.l.b16 %v377
    %v414 = vunpack.c.l.b16 %v378
    %v415 = vunpack.c.l.b16 %v379
    %v416 = vunpack.c.l.b16 %v380
    %v417 = vunpack.c.l.b16 %v381
    %v418 = vunpack.c.l.b16 %v382
    %v419 = vunpack.c.l.b16 %v383
    %v420 = vunpack.c.l.b16 %v384
    %v421 = vunpack.c.l.b16 %v385
    %v422 = vpack.c.b16 %v407, %v406
    %v423 = vpack.c.b16 %v409, %v408
    %v424 = vpack.c.b16 %v411, %v410
    %v425 = vpack.c.b16 %v413, %v412
    %v426 = vpack.c.b16 %v415, %v414
    %v427 = vpack.c.b16 %v417, %v416
    %v428 = vpack.c.b16 %v419, %v418
    %v429 = vpack.c.b16 %v421, %v420
    %438 = vmatpush.bf16.msra.mxu0 %v429
    %439 = vmatpush.bf16.msra.mxu0 %v428
    %440 = vmatpush.bf16.msra.mxu0 %v427
    %441 = vmatpush.bf16.msra.mxu0 %v426
    %442 = vmatpush.bf16.msra.mxu0 %v425
    %443 = vmatpush.bf16.msra.mxu0 %v424
    %444 = vmatpush.bf16.msra.mxu0 %v423
    %445 = vmatpush.bf16.msra.mxu0 %v422
    %446 = vmatmul.bf16.gmra.mxu0 %v369
    %v447 = vpop.f32.mrf.mxu0
    %v448 = vadd.f32 %v388, %v447
    %v449 = vpop.f32.mrf.mxu0
    %v450 = vadd.f32 %v388, %v449
    %451 = vdwg.mxu0
    %vm452 = vcmp.ge.f32.partialorder %v448, 0.0
    %vm453 = vcmp.ge.f32.partialorder %v450, 0.0
    %v454 = vmul.f32 %v448, 0.1
    %v455 = vmul.f32 %v450, 0.1
    %v456 = vsel %vm452, %v448, %v454
    %v457 = vsel %vm453, %v450, %v455
    %v458 = vsub.f32 0.0, %v456
    %v459 = vsub.f32 0.0, %v457
    %v460 = vmul.f32 %v458, 1.442695
    %v461 = vpow.pop %v460
    %v462 = vmul.f32 %v459, 1.442695
    %v463 = vpow.pop %v462
    %v464 = vadd.f32 %v461, 1.0
    %v465 = vadd.f32 %v463, 1.0
    %v466 = vrcp.pop %v464
    %v467 = vrcp.pop %v465
    %v468 = vpack.c.bf16 %v466, %v466
    %v469 = vpack.c.bf16 %v467, %v467
    %470 = vst [vmem:[%s9] sm:$0xf] %v468
    %471 = vst [vmem:[%s9 + $0x4] sm:$0xf] %v469
    // Predicated region
    $region54: #{dnn_irm_forward.1} parent=1 // pred_check
      _
    $region55: #{dnn_irm_forward.1} parent=1 // pred_check_branch
      %473 = sbr.rel (0) target = $region57
    $region56: #{dnn_irm_forward.1} parent=1 // pred_region
      _
    $region57: #{dnn_irm_forward.1} parent=1 // pred_fallthru
      _
    // Predicated region
    $region58: #{dnn_irm_forward.1} parent=1 // pred_check
      _
    $region59: #{dnn_irm_forward.1} parent=1 // pred_check_branch
      %475 = sbr.rel (0) target = $region61
    $region60: #{dnn_irm_forward.1} parent=1 // pred_region
      _
    $region61: #{dnn_irm_forward.1} parent=1 // pred_fallthru
      _
    %476 = vsyncpa [#allocation3], 1
    %477 = vsyncpa [#allocation5], 1
    %478 = vsyncpa [#allocation8], 1

</llo_original>
